<compile_context>
chip_gen: v7x
topology: tpu7x:2x2x1
jax: 0.10.0
libtpu: 0.0.40
codegen_flags: <defaults>
</compile_context>

<pallas_src>
import functools

import jax
import jax.numpy as jnp
import numpy as np
from jax.experimental import pallas as pl
from jax.experimental.pallas import tpu as pltpu


def _round_up(n, m):
    return -(-n // m) * m


# ----------------------------------------------------------------------------
# Kernel: one grid step processes a block of `num_b` batch elements.
# ----------------------------------------------------------------------------
def _msf_kernel(x_ref, dft_ref, w_ref, bias_ref, o_ref, slab_ref, *,
                num_b, f_pad, lead, trail, ch, taps_by_scale):
    cdt = slab_ref.dtype
    rows = num_b * f_pad

    # Zero the guard rows on every step (cheap, and megacore-safe: scratch is
    # per-core and program_id(0)==0 may never run on a given core when the
    # grid axis is sharded "parallel").
    slab_ref[pl.ds(0, lead), :] = jnp.zeros((lead, ch), cdt)
    slab_ref[pl.ds(lead + rows, trail), :] = jnp.zeros((trail, ch), cdt)

    # 1) real part of rfft via the folded half cos-DFT.  One matmul per batch
    #    element (N = C); matmul 2 below (N = n_taps*C) dominates, so this loop
    #    is not the bottleneck even for small C.
    dft = dft_ref[...]                                            # (f_pad, T_fold)
    for b in range(num_b):                                        # num_b static & small
        xb = x_ref[b].astype(cdt)                                 # (T_fold, C)
        fb = jnp.dot(dft, xb, preferred_element_type=jnp.float32)  # (f_pad, C) f32
        slab_ref[pl.ds(lead + b * f_pad, f_pad), :] = fb.astype(cdt)

    # 2) every conv tap of every scale fused into ONE channel-mixing matmul.
    y = jnp.dot(slab_ref[...], w_ref[...],
                preferred_element_type=jnp.float32)               # (slab_rows, n_taps*C)

    # 3) 'same'-padded Conv1d == shift-and-add along frequency, done with static
    #    row-offset slices.  The `lead` zero rows + the >=guard zero rows at the
    #    tail of every per-batch f_pad block make every slice in-bounds and give
    #    exact zero-padding semantics with no masks and no batch leakage.
    for si, staps in enumerate(taps_by_scale):
        acc = None
        for (p, d) in staps:
            blk = y[lead + d:lead + d + rows, p * ch:(p + 1) * ch]  # (rows, C) f32
            acc = blk if acc is None else acc + blk
        acc = acc + bias_ref[:, si * ch:(si + 1) * ch]            # (rows,C)+(1,C)
        # 4) sublane-dense store (rows is a multiple of 8); wrapper trims F.
        o_ref[:, si * ch:(si + 1) * ch] = acc.astype(o_ref.dtype)


# ----------------------------------------------------------------------------
# Cached O(T^2) host-side constructions & feature detection.
# ----------------------------------------------------------------------------
_DFT_CACHE = {}


def _dft_half(T, f_pad, t_fold, dtype):
    """Half-width real-DFT matrix: D[f, t] = cos(2*pi*f*t/T), zero-padded."""
    key = (T, f_pad, t_fold, np.dtype(dtype).name)
    hit = _DFT_CACHE.get(key)
    if hit is not None:
        return hit
    F = T // 2 + 1
    t_half = T // 2 + 1
    d = np.zeros((f_pad, t_fold), np.float32)
    f = np.arange(F, dtype=np.float64)[:, None]
    t = np.arange(t_half, dtype=np.float64)[None, :]
    d[:F, :t_half] = np.cos(2.0 * np.pi * f * t / T)
    arr = jnp.asarray(d, dtype)
    _DFT_CACHE[key] = arr
    return arr


def _vmem_capacity_bytes():
    try:
        return int(pltpu.get_tpu_info().vmem_capacity_bytes)
    except Exception:
        return 64 << 20          # conservative default (v7x physical VMEM / core)


@functools.lru_cache(maxsize=1)
def _buffered_supported():
    """Feature-detect pl.Buffered(1) with a tiny probe compile (no broad
    try/except around the real kernel, which would mask genuine errors)."""
    if not hasattr(pl, "Buffered"):
        return False
    try:
        spec = pl.BlockSpec((8, 128), lambda i: (0, 0),
                            pipeline_mode=pl.Buffered(1))
    except TypeError:
        return False

    def _probe(x_ref, o_ref):
        o_ref[...] = x_ref[...]

    try:
        fn = pl.pallas_call(
            _probe,
            out_shape=jax.ShapeDtypeStruct((8, 128), jnp.float32),
            grid=(2,),
            in_specs=[spec],
            out_specs=pl.BlockSpec((8, 128), lambda i: (0, 0)))
        jax.jit(fn).lower(jax.ShapeDtypeStruct((8, 128), jnp.float32)).compile()
        return True
    except Exception:
        return False


def _pick_block_b(B, f_pad, lead, trail, t_fold, C, n_taps, S, cbytes,
                  budget, use_buffered, target_rows=1024):
    """rows-target + explicit VMEM budget rule (review item); keeps >=2 grid
    steps so the parallel grid axis has work for both TensorCores on v7x."""
    const_factor = 1 if use_buffered else 2
    lc, lnt = _round_up(C, 128), _round_up(n_taps * C, 128)
    lsc, ltf = _round_up(S * C, 128), _round_up(t_fold, 128)

    def est(bb):
        rows = bb * f_pad
        slab = lead + rows + trail
        e = 0
        e += 2 * bb * t_fold * lc * cbytes              # x block, double-buffered
        e += 2 * rows * lsc * 4                          # out block, double-buffered
        e += const_factor * f_pad * ltf * cbytes         # DFT matrix
        e += const_factor * _round_up(C, 8) * lnt * cbytes   # fused conv weight
        e += const_factor * 8 * lsc * 4                  # bias
        e += slab * lc * cbytes                          # fft slab scratch
        e += slab * lnt * 4                              # y f32 intermediate
        e += 3 * rows * lc * 4                           # live accumulator temps
        return e

    block_b = 1
    cand = 2
    while cand <= B:
        if cand * f_pad > target_rows:
            break
        if est(cand) > budget:
            break
        block_b = cand
        cand += 1
    if B > 1:                       # >=2 grid steps for multi-TensorCore chips
        block_b = min(block_b, -(-B // 2))
    return block_b


# ----------------------------------------------------------------------------
# Jitted implementation (fold, pad, fuse weights, pallas_call, trim).
# ----------------------------------------------------------------------------
@functools.partial(
    jax.jit,
    static_argnames=("taps", "n_scales", "block_b", "f_pad", "lead", "trail",
                     "t_fold", "f_out", "compute_dtype", "use_buffered",
                     "vmem_limit"))
def _msf_jit(x, dft, conv_w, conv_b, *, taps, n_scales, block_b, f_pad, lead,
             trail, t_fold, f_out, compute_dtype, use_buffered, vmem_limit):
    B, T, C = x.shape
    t_half = T // 2 + 1
    S = n_scales
    n_taps = len(taps)

    # Fold x with cos symmetry: Re(rfft(x))[f] = sum_{t<=T/2} cos(2*pi*f*t/T)*xf[t]
    mirror = (T - np.arange(t_half)) % T
    fold = np.ones((t_half,), np.float32)
    fold[0] = 0.0
    if T % 2 == 0:
        fold[T // 2] = 0.0
    xf32 = x.astype(jnp.float32)
    xf = xf32[:, :t_half, :] + xf32[:, mirror, :] * fold[None, :, None]
    xf = xf.astype(compute_dtype)

    # Pad batch to a multiple of block_b and time to an 8-aligned K dim.
    n_blocks = -(-B // block_b)
    B_pad = n_blocks * block_b
    xf = jnp.pad(xf, ((0, B_pad - B), (0, t_fold - t_half), (0, 0)))

    # Fused channel-mixing weight: column block p holds weight_si[:, :, j].T.
    W = jnp.concatenate([conv_w[si][:, :, j].T for (si, j, _) in taps],
                        axis=1).astype(compute_dtype)              # (C, n_taps*C)
    bias = jnp.concatenate(list(conv_b))[None, :].astype(jnp.float32)  # (1, S*C)

    taps_by_scale = tuple(
        tuple((p, d) for p, (si, _, d) in enumerate(taps) if si == s)
        for s in range(S))

    kernel = functools.partial(
        _msf_kernel, num_b=block_b, f_pad=f_pad, lead=lead, trail=trail,
        ch=C, taps_by_scale=taps_by_scale)

    def const_spec(shape):
        idx = lambda g, _n=len(shape): (0,) * _n
        if use_buffered:   # grid-invariant operand: single-buffered (VMEM headroom)
            return pl.BlockSpec(shape, idx, pipeline_mode=pl.Buffered(1))
        return pl.BlockSpec(shape, idx)

    rows = block_b * f_pad
    out_flat = pl.pallas_call(
        kernel,
        out_shape=jax.ShapeDtypeStruct((B_pad * f_pad, S * C), x.dtype),
        grid_spec=pltpu.PrefetchScalarGridSpec(
            num_scalar_prefetch=0,
            grid=(n_blocks,),
            in_specs=[
                pl.BlockSpec((block_b, t_fold, C), lambda g: (g, 0, 0)),
                const_spec((f_pad, t_fold)),
                const_spec((C, n_taps * C)),
                const_spec((1, S * C)),
            ],
            out_specs=pl.BlockSpec((rows, S * C), lambda g: (g, 0)),
            scratch_shapes=[pltpu.VMEM((lead + rows + trail, C), compute_dtype)],
        ),
        compiler_params=pltpu.CompilerParams(
            dimension_semantics=("parallel",),
            vmem_limit_bytes=vmem_limit),
    )(xf, dft.astype(compute_dtype), W, bias)

    # Trim padded frequencies / padded batches outside the kernel (dense store
    # inside, cheap slice here).
    out = out_flat.reshape(B_pad, f_pad, S * C)[:B, :f_out, :]
    return out


# ----------------------------------------------------------------------------
# Public wrapper.
# ----------------------------------------------------------------------------
def multiscale_fourier(x, conv_weights, conv_biases, scales=(1, 2, 4), *,
                       compute_dtype=jnp.bfloat16, block_b=None):
    B, T, C = x.shape
    F = T // 2 + 1
    t_half = T // 2 + 1
    t_fold = _round_up(t_half, 8)
    S = len(scales)

    # conv taps: (scale index, tap index, frequency shift) for PyTorch 'same'
    # padding (left pad = (k-1)//2, so tap j reads frequency f + j - (k-1)//2).
    taps = []
    for si, k in enumerate(scales):
        left = (k - 1) // 2
        for j in range(k):
            taps.append((si, j, j - left))
    taps = tuple(taps)
    n_taps = len(taps)
    max_d = max((d for *_, d in taps), default=0)
    min_d = min((d for *_, d in taps), default=0)
    guard = max(max_d, -min_d, 0)

    f_pad = _round_up(F + guard, 8)          # sublane aligned + per-batch guard rows
    lead = _round_up(max(guard, 1), 8)       # 8-aligned leading zero guard rows
    trail = lead

    cbytes = np.dtype(compute_dtype).itemsize
    vmem_limit = int(min(_vmem_capacity_bytes() * 0.8, 120 * (1 << 20)))
    use_buffered = _buffered_supported()

    if block_b is None:
        block_b = _pick_block_b(B, f_pad, lead, trail, t_fold, C, n_taps, S,
                                cbytes, vmem_limit // 2, use_buffered)
    block_b = max(1, int(block_b))

    dft = _dft_half(T, f_pad, t_fold, compute_dtype)

    return _msf_jit(
        x, dft,
        tuple(jnp.asarray(w) for w in conv_weights),
        tuple(jnp.asarray(b) for b in conv_biases),
        taps=taps, n_scales=S, block_b=block_b, f_pad=f_pad, lead=lead,
        trail=trail, t_fold=t_fold, f_out=F, compute_dtype=compute_dtype,
        use_buffered=use_buffered, vmem_limit=vmem_limit)


# ----------------------------------------------------------------------------
# Pure-JAX reference (jnp.fft + explicit 'same' conv) for the correctness check.
# ----------------------------------------------------------------------------
def _reference(x, conv_weights, conv_biases, scales):
    Fq = x.shape[1] // 2 + 1
    fft = jnp.fft.rfft(x, axis=1).real                            # (B, F, C)
    outs = []
    for si, k in enumerate(scales):
        left = (k - 1) // 2
        right = (k - 1) - left
        xp = jnp.pad(fft, ((0, 0), (left, right), (0, 0)))
        o = jnp.zeros(fft.shape[:2] + (conv_weights[si].shape[0],), jnp.float32)
        for j in range(k):
            o = o + jnp.einsum('bfc,oc->bfo',
                               xp[:, j:j + Fq, :], conv_weights[si][:, :, j])
        outs.append(o + conv_biases[si][None, None, :])
    return jnp.concatenate(outs, axis=-1)


# ----------------------------------------------------------------------------
if __name__ == "__main__":
    B, T, C = 2, 16, 32                     # F = 9 (odd, exercises padding/trim)
    scales = (1, 2, 4)

    key = jax.random.PRNGKey(0)
    ks = jax.random.split(key, 2 * len(scales) + 1)
    conv_w = [0.05 * jax.random.normal(ks[2 * i], (C, C, k), jnp.float32)
              for i, k in enumerate(scales)]
    conv_b = [0.05 * jax.random.normal(ks[2 * i + 1], (C,), jnp.float32)
              for i in range(len(scales))]
    x = jax.random.normal(ks[-1], (B, T, C), jnp.float32)

    out = jax.block_until_ready(multiscale_fourier(x, conv_w, conv_b, scales))
    assert out.shape == (B, T // 2 + 1, len(scales) * C), out.shape

    ref = jax.block_until_ready(_reference(x, conv_w, conv_b, scales))
    # bf16 MXU operands with f32 accumulation -> loose-but-meaningful tolerance.
    np.testing.assert_allclose(np.asarray(out), np.asarray(ref),
                               rtol=5e-2, atol=5e-2)
    print("KERNEL_OK")
</pallas_src>

<mosaic_0001>
module attributes {stable_mosaic.version = 11 : i64} {
  func.func @_msf_kernel(%arg0: i32, %arg1: memref<1x16x32xbf16, #tpu.memory_space<vmem>>, %arg2: memref<16x16xbf16, #tpu.memory_space<vmem>>, %arg3: memref<32x224xbf16, #tpu.memory_space<vmem>>, %arg4: memref<1x96xf32, #tpu.memory_space<vmem>>, %arg5: memref<16x96xf32, #tpu.memory_space<vmem>>, %arg6: memref<32x32xbf16, #tpu.memory_space<vmem>>) attributes {dimension_semantics = [#tpu.dimension_semantics<parallel>], iteration_bounds = array<i64: 2>, scalar_prefetch = 0 : i64, scratch_operands = 1 : i64, tpu.core_type = #tpu.core_type<tc>, window_params = [{transform_indices = @transform_0, window_bounds = array<i64: 1, 16, 32>}, {pipeline_mode = #tpu.pipeline_mode<synchronous>, transform_indices = @transform_1, window_bounds = array<i64: 16, 16>}, {pipeline_mode = #tpu.pipeline_mode<synchronous>, transform_indices = @transform_2, window_bounds = array<i64: 32, 224>}, {pipeline_mode = #tpu.pipeline_mode<synchronous>, transform_indices = @transform_3, window_bounds = array<i64: 1, 96>}, {transform_indices = @transform_4, window_bounds = array<i64: 16, 96>}]} {
    %cst = arith.constant 0.000000e+00 : bf16
    %0 = vector.broadcast %cst : bf16 to vector<8x32xbf16>
    %c0 = arith.constant 0 : index
    %c0_0 = arith.constant 0 : index
    %1 = vector.load %arg6[%c0, %c0_0] : memref<32x32xbf16, #tpu.memory_space<vmem>>, vector<8x32xbf16>
    tpu.vector_store %arg6[%c0, %c0_0], %0 {strides = array<i32>} : memref<32x32xbf16, #tpu.memory_space<vmem>>, vector<8x32xbf16>,
    %cst_1 = arith.constant 0.000000e+00 : bf16
    %2 = vector.broadcast %cst_1 : bf16 to vector<8x32xbf16>
    %c24 = arith.constant 24 : index
    %c0_2 = arith.constant 0 : index
    %3 = vector.load %arg6[%c24, %c0_2] : memref<32x32xbf16, #tpu.memory_space<vmem>>, vector<8x32xbf16>
    tpu.vector_store %arg6[%c24, %c0_2], %2 {strides = array<i32>} : memref<32x32xbf16, #tpu.memory_space<vmem>>, vector<8x32xbf16>,
    %c0_3 = arith.constant 0 : index
    %c0_4 = arith.constant 0 : index
    %4 = vector.load %arg2[%c0_3, %c0_4] : memref<16x16xbf16, #tpu.memory_space<vmem>>, vector<16x16xbf16>
    %c0_5 = arith.constant 0 : index
    %c0_6 = arith.constant 0 : index
    %c0_7 = arith.constant 0 : index
    %5 = vector.load %arg1[%c0_5, %c0_6, %c0_7] : memref<1x16x32xbf16, #tpu.memory_space<vmem>>, vector<1x16x32xbf16>
    %6 = vector.shape_cast %5 : vector<1x16x32xbf16> to vector<16x32xbf16>
    %cst_8 = arith.constant dense<0.000000e+00> : vector<16x32xf32>
    %7 = tpu.matmul %4, %6, %cst_8 {dimension_numbers = #tpu.dot_dimension_numbers<[1], [0], [0], [1], [0, 0, 1, 1], [], []>} : vector<16x16xbf16>, vector<16x32xbf16>, vector<16x32xf32> -> vector<16x32xf32>
    %8 = arith.truncf %7 : vector<16x32xf32> to vector<16x32xbf16>
    %c8 = arith.constant 8 : index
    %c0_9 = arith.constant 0 : index
    %9 = vector.load %arg6[%c8, %c0_9] : memref<32x32xbf16, #tpu.memory_space<vmem>>, vector<16x32xbf16>
    tpu.vector_store %arg6[%c8, %c0_9], %8 {strides = array<i32>} : memref<32x32xbf16, #tpu.memory_space<vmem>>, vector<16x32xbf16>,
    %c0_10 = arith.constant 0 : index
    %c0_11 = arith.constant 0 : index
    %10 = vector.load %arg6[%c0_10, %c0_11] : memref<32x32xbf16, #tpu.memory_space<vmem>>, vector<32x32xbf16>
    %c0_12 = arith.constant 0 : index
    %c0_13 = arith.constant 0 : index
    %11 = vector.load %arg3[%c0_12, %c0_13] : memref<32x224xbf16, #tpu.memory_space<vmem>>, vector<32x224xbf16>
    %cst_14 = arith.constant dense<0.000000e+00> : vector<32x224xf32>
    %12 = tpu.matmul %10, %11, %cst_14 {dimension_numbers = #tpu.dot_dimension_numbers<[1], [0], [0], [1], [0, 0, 1, 1], [], []>} : vector<32x32xbf16>, vector<32x224xbf16>, vector<32x224xf32> -> vector<32x224xf32>
    %13 = vector.extract_strided_slice %12 {offsets = [8, 0], sizes = [16, 32], strides = [1, 1]} : vector<32x224xf32> to vector<16x32xf32>
    %c0_15 = arith.constant 0 : index
    %c0_16 = arith.constant 0 : index
    %14 = vector.load %arg4[%c0_15, %c0_16] : memref<1x96xf32, #tpu.memory_space<vmem>>, vector<1x32xf32>
    %15 = vector.broadcast %14 : vector<1x32xf32> to vector<16x32xf32>
    %16 = arith.addf %13, %15 : vector<16x32xf32>
    %c0_17 = arith.constant 0 : index
    %c0_18 = arith.constant 0 : index
    %17 = vector.load %arg5[%c0_17, %c0_18] : memref<16x96xf32, #tpu.memory_space<vmem>>, vector<16x32xf32>
    tpu.vector_store %arg5[%c0_17, %c0_18], %16 {strides = array<i32>} : memref<16x96xf32, #tpu.memory_space<vmem>>, vector<16x32xf32>,
    %18 = vector.extract_strided_slice %12 {offsets = [8, 32], sizes = [16, 32], strides = [1, 1]} : vector<32x224xf32> to vector<16x32xf32>
    %19 = vector.extract_strided_slice %12 {offsets = [9, 64], sizes = [16, 32], strides = [1, 1]} : vector<32x224xf32> to vector<16x32xf32>
    %20 = arith.addf %18, %19 : vector<16x32xf32>
    %c0_19 = arith.constant 0 : index
    %c32 = arith.constant 32 : index
    %21 = vector.load %arg4[%c0_19, %c32] : memref<1x96xf32, #tpu.memory_space<vmem>>, vector<1x32xf32>
    %22 = vector.broadcast %21 : vector<1x32xf32> to vector<16x32xf32>
    %23 = arith.addf %20, %22 : vector<16x32xf32>
    %c0_20 = arith.constant 0 : index
    %c32_21 = arith.constant 32 : index
    %24 = vector.load %arg5[%c0_20, %c32_21] : memref<16x96xf32, #tpu.memory_space<vmem>>, vector<16x32xf32>
    tpu.vector_store %arg5[%c0_20, %c32_21], %23 {strides = array<i32>} : memref<16x96xf32, #tpu.memory_space<vmem>>, vector<16x32xf32>,
    %25 = vector.extract_strided_slice %12 {offsets = [7, 96], sizes = [16, 32], strides = [1, 1]} : vector<32x224xf32> to vector<16x32xf32>
    %26 = vector.extract_strided_slice %12 {offsets = [8, 128], sizes = [16, 32], strides = [1, 1]} : vector<32x224xf32> to vector<16x32xf32>
    %27 = arith.addf %25, %26 : vector<16x32xf32>
    %28 = vector.extract_strided_slice %12 {offsets = [9, 160], sizes = [16, 32], strides = [1, 1]} : vector<32x224xf32> to vector<16x32xf32>
    %29 = arith.addf %27, %28 : vector<16x32xf32>
    %30 = vector.extract_strided_slice %12 {offsets = [10, 192], sizes = [16, 32], strides = [1, 1]} : vector<32x224xf32> to vector<16x32xf32>
    %31 = arith.addf %29, %30 : vector<16x32xf32>
    %c0_22 = arith.constant 0 : index
    %c64 = arith.constant 64 : index
    %32 = vector.load %arg4[%c0_22, %c64] : memref<1x96xf32, #tpu.memory_space<vmem>>, vector<1x32xf32>
    %33 = vector.broadcast %32 : vector<1x32xf32> to vector<16x32xf32>
    %34 = arith.addf %31, %33 : vector<16x32xf32>
    %c0_23 = arith.constant 0 : index
    %c64_24 = arith.constant 64 : index
    %35 = vector.load %arg5[%c0_23, %c64_24] : memref<16x96xf32, #tpu.memory_space<vmem>>, vector<16x32xf32>
    tpu.vector_store %arg5[%c0_23, %c64_24], %34 {strides = array<i32>} : memref<16x96xf32, #tpu.memory_space<vmem>>, vector<16x32xf32>,
    return
  }
  func.func @transform_0(%arg0: i32) -> (i32, i32, i32) {
    %c0_i32 = arith.constant 0 : i32
    %c0_i32_0 = arith.constant 0 : i32
    %c0_i32_1 = arith.constant 0 : i32
    return %arg0, %c0_i32, %c0_i32_0 : i32, i32, i32
  }
  func.func @transform_1(%arg0: i32) -> (i32, i32) {
    %c0_i32 = arith.constant 0 : i32
    %c0_i32_0 = arith.constant 0 : i32
    %c0_i32_1 = arith.constant 0 : i32
    return %c0_i32, %c0_i32_0 : i32, i32
  }
  func.func @transform_2(%arg0: i32) -> (i32, i32) {
    %c0_i32 = arith.constant 0 : i32
    %c0_i32_0 = arith.constant 0 : i32
    %c0_i32_1 = arith.constant 0 : i32
    return %c0_i32, %c0_i32_0 : i32, i32
  }
  func.func @transform_3(%arg0: i32) -> (i32, i32) {
    %c0_i32 = arith.constant 0 : i32
    %c0_i32_0 = arith.constant 0 : i32
    %c0_i32_1 = arith.constant 0 : i32
    return %c0_i32, %c0_i32_0 : i32, i32
  }
  func.func @transform_4(%arg0: i32) -> (i32, i32) {
    %c0_i32 = arith.constant 0 : i32
    %c0_i32_0 = arith.constant 0 : i32
    return %arg0, %c0_i32 : i32, i32
  }
}

</mosaic_0001>

<llo_original>
// kernel: _msf_jit.1
$region0: #{_msf_jit.1}
  #allocation0 [shape = 'u32[]', space=smem, size = 0x4, offset = 0x4, fixed_abs, tag = 'smem constant byte address 0x4 - core index']
  #allocation1 [shape = 'u32[144,128]{1,0:T(1,128)}', space=vmem, size = 0x12000, scoped, tag = 'internal scratch']
  #allocation2 [shape = 'bf16[32,32]{1,0:T(16,128)(2,1)}', space=vmem, size = 0x2000, scoped, tag = 'scratch operand']
  %s0 = inlined_call_operand.vmem [shape: bf16[2,16,32], index: 0, kind: input, shape index: {}]
  %s1 = inlined_call_operand.vmem [shape: bf16[16,16], index: 1, kind: input, shape index: {}]
  %s2 = inlined_call_operand.vmem [shape: bf16[32,224], index: 2, kind: input, shape index: {}]
  %s3 = inlined_call_operand.vmem [shape: f32[1,96], index: 3, kind: input, shape index: {}]
  %s4 = inlined_call_operand.vmem [shape: f32[32,96], index: 4, kind: output, shape index: {}]
  %s5 = sld [smem:[#allocation0]]
  $region49: #{_msf_jit.1} parent=0
    _
  %s7 = ssub.s32 1, %s5
  %s8 = scalar_select 0, %s7, %s5
  loop: start=0, step=1, limit=4
  $region2: #{_msf_jit.1} parent=0 // loop_pre_header
    _
  $region3: #{_msf_jit.1} parent=0 // loop_header
    %s10 = sphi 0, %s14
    %p11 = scmp.ge.s32.totalorder %s10, 4
    %s20 = sphi 0, %s22
    %s23 = sphi 0, %s20
    %s24 = sphi 0, %s23
    %s40 = sphi 0, %s24
    %s44 = sphi 0, %s44
    %s46 = sphi 0, %s44
    %s47 = sphi 0, %s46
    %s61 = sphi 0, %s47
    %s65 = sphi 0, %s65
    %s67 = sphi 0, %s65
    %s68 = sphi 0, %s67
    %s82 = sphi 0, %s68
    %s86 = sphi 0, %s86
    %s88 = sphi 0, %s86
    %s89 = sphi 0, %s88
    %s103 = sphi 0, %s89
    %s109 = sphi 0, %s111
    %s112 = sphi 0, %s109
    %s113 = sphi 0, %s112
    %s129 = sphi 0, %s113
  $region4: #{_msf_jit.1} parent=0 // loop_header_branch
    %13 = sbr.rel (%p11) target = $region8
  $region5: #{_msf_jit.1} parent=0 // loop_body
    %s15 = ssub.s32 %s10, 1
    %s16 = ssub.s32 %s10, 2
    %s17 = sadd.s32 %s10, 1
    %s18 = ssub.s32 %s10, %s17
    %p19 = scmp.eq.s32.totalorder %s18, 0
    %s21 = sadd.s32 %s20, 1
    %s22 = scalar_select %p19, %s20, %s21
    %p25 = pneg %p19
    %p26 = scmp.eq.s32.totalorder %s10, 1
    %p27 = por %p25, %p26
    %p28 = scmp.ne.s32.totalorder %s20, %s23
    %p29 = scmp.eq.s32.totalorder %s10, 0
    %p30 = por %p28, %p29
    %p31 = scmp.ne.s32.totalorder %s20, %s23
    %p32 = scmp.eq.s32.totalorder %s15, 1
    %p33 = por %p31, %p32
    %p34 = scmp.ne.s32.totalorder %s23, %s24
    %p35 = scmp.eq.s32.totalorder %s15, 0
    %p36 = por %p34, %p35
    %p37 = scmp.ne.s32.totalorder %s23, %s24
    %p38 = scmp.eq.s32.totalorder %s16, 1
    %p39 = por %p37, %p38
    %p41 = scmp.ne.s32.totalorder %s24, %s40
    %p42 = scmp.eq.s32.totalorder %s16, 0
    %p43 = por %p41, %p42
    %s45 = sadd.s32 %s44, 1
    %p48 = scmp.eq.s32.totalorder %s10, 1
    %p49 = scmp.ne.s32.totalorder %s44, %s46
    %p50 = scmp.eq.s32.totalorder %s10, 0
    %p51 = por %p49, %p50
    %p52 = scmp.ne.s32.totalorder %s44, %s46
    %p53 = scmp.eq.s32.totalorder %s15, 1
    %p54 = por %p52, %p53
    %p55 = scmp.ne.s32.totalorder %s46, %s47
    %p56 = scmp.eq.s32.totalorder %s15, 0
    %p57 = por %p55, %p56
    %p58 = scmp.ne.s32.totalorder %s46, %s47
    %p59 = scmp.eq.s32.totalorder %s16, 1
    %p60 = por %p58, %p59
    %p62 = scmp.ne.s32.totalorder %s47, %s61
    %p63 = scmp.eq.s32.totalorder %s16, 0
    %p64 = por %p62, %p63
    %s66 = sadd.s32 %s65, 1
    %p69 = scmp.eq.s32.totalorder %s10, 1
    %p70 = scmp.ne.s32.totalorder %s65, %s67
    %p71 = scmp.eq.s32.totalorder %s10, 0
    %p72 = por %p70, %p71
    %p73 = scmp.ne.s32.totalorder %s65, %s67
    %p74 = scmp.eq.s32.totalorder %s15, 1
    %p75 = por %p73, %p74
    %p76 = scmp.ne.s32.totalorder %s67, %s68
    %p77 = scmp.eq.s32.totalorder %s15, 0
    %p78 = por %p76, %p77
    %p79 = scmp.ne.s32.totalorder %s67, %s68
    %p80 = scmp.eq.s32.totalorder %s16, 1
    %p81 = por %p79, %p80
    %p83 = scmp.ne.s32.totalorder %s68, %s82
    %p84 = scmp.eq.s32.totalorder %s16, 0
    %p85 = por %p83, %p84
    %s87 = sadd.s32 %s86, 1
    %p90 = scmp.eq.s32.totalorder %s10, 1
    %p91 = scmp.ne.s32.totalorder %s86, %s88
    %p92 = scmp.eq.s32.totalorder %s10, 0
    %p93 = por %p91, %p92
    %p94 = scmp.ne.s32.totalorder %s86, %s88
    %p95 = scmp.eq.s32.totalorder %s15, 1
    %p96 = por %p94, %p95
    %p97 = scmp.ne.s32.totalorder %s88, %s89
    %p98 = scmp.eq.s32.totalorder %s15, 0
    %p99 = por %p97, %p98
    %p100 = scmp.ne.s32.totalorder %s88, %s89
    %p101 = scmp.eq.s32.totalorder %s16, 1
    %p102 = por %p100, %p101
    %p104 = scmp.ne.s32.totalorder %s89, %s103
    %p105 = scmp.eq.s32.totalorder %s16, 0
    %p106 = por %p104, %p105
    %s107 = ssub.s32 %s10, %s17
    %p108 = scmp.eq.s32.totalorder %s107, 0
    %s110 = sadd.s32 %s109, 1
    %s111 = scalar_select %p108, %s109, %s110
    %p114 = pneg %p108
    %p115 = scmp.eq.s32.totalorder %s10, 1
    %p116 = por %p114, %p115
    %p117 = scmp.ne.s32.totalorder %s109, %s112
    %p118 = scmp.eq.s32.totalorder %s10, 0
    %p119 = por %p117, %p118
    %p120 = scmp.ne.s32.totalorder %s109, %s112
    %p121 = scmp.eq.s32.totalorder %s15, 1
    %p122 = por %p120, %p121
    %p123 = scmp.ne.s32.totalorder %s112, %s113
    %p124 = scmp.eq.s32.totalorder %s15, 0
    %p125 = por %p123, %p124
    %p126 = scmp.ne.s32.totalorder %s112, %s113
    %p127 = scmp.eq.s32.totalorder %s16, 1
    %p128 = por %p126, %p127
    %p130 = scmp.ne.s32.totalorder %s113, %s129
    %p131 = scmp.eq.s32.totalorder %s16, 0
    %p132 = por %p130, %p131
    %p133 = scmp.le.s32.totalorder 1, %s10
    %p134 = scmp.lt.s32.totalorder %s10, 3
    %p135 = pnand %p133, %p134
    %p136 = pneg %p135
    // Predicated region
    $region9: #{_msf_jit.1} parent=5 // pred_check
      _
    $region10: #{_msf_jit.1} parent=5 // pred_check_branch
      %138 = sbr.rel (%p135) target = $region12
    $region11: #{_msf_jit.1} parent=5 // pred_region
      %s139 = ssub.s32 %s10, 1
      // Predicated region
      $region13: #{_msf_jit.1} parent=11 // pred_check
        %p140 = pneg %p57
      $region14: #{_msf_jit.1} parent=11 // pred_check_branch
        %142 = sbr.rel (%p140) target = $region16
      $region15: #{_msf_jit.1} parent=11 // pred_region
        _
      $region16: #{_msf_jit.1} parent=11 // pred_fallthru
        _
      // Predicated region
      $region17: #{_msf_jit.1} parent=11 // pred_check
        %p143 = pneg %p78
      $region18: #{_msf_jit.1} parent=11 // pred_check_branch
        %145 = sbr.rel (%p143) target = $region20
      $region19: #{_msf_jit.1} parent=11 // pred_region
        _
      $region20: #{_msf_jit.1} parent=11 // pred_fallthru
        _
      // Predicated region
      $region21: #{_msf_jit.1} parent=11 // pred_check
        %p146 = pneg %p99
      $region22: #{_msf_jit.1} parent=11 // pred_check_branch
        %148 = sbr.rel (%p146) target = $region24
      $region23: #{_msf_jit.1} parent=11 // pred_region
        _
      $region24: #{_msf_jit.1} parent=11 // pred_fallthru
        _
    $region12: #{_msf_jit.1} parent=5 // pred_fallthru
      _
    %p149 = scmp.lt.s32.totalorder %s10, 2
    // Predicated region
    $region25: #{_msf_jit.1} parent=5 // pred_check
      %p150 = pneg %p149
    $region26: #{_msf_jit.1} parent=5 // pred_check_branch
      %152 = sbr.rel (%p150) target = $region28
    $region27: #{_msf_jit.1} parent=5 // pred_region
      // Predicated region
      $region29: #{_msf_jit.1} parent=27 // pred_check
        %p153 = pneg %p30
      $region30: #{_msf_jit.1} parent=27 // pred_check_branch
        %155 = sbr.rel (%p153) target = $region32
      $region31: #{_msf_jit.1} parent=27 // pred_region
        %p156 = scmp.lt.s32.totalorder %s10, 1
        %s157 = scalar_select %p156, %s10, 1
        %s158 = smul.addr %s157, 2
        %s159 = smul.addr %s158, 4
        %s160 = scalar_lea.vmem %s0, %s159
      $region32: #{_msf_jit.1} parent=27 // pred_fallthru
        _
    $region28: #{_msf_jit.1} parent=5 // pred_fallthru
      _
    %p161 = scmp.le.s32.totalorder 1, %s10
    %p162 = scmp.lt.s32.totalorder %s10, 3
    %p163 = pnand %p161, %p162
    %p164 = pneg %p163
    // Predicated region
    $region33: #{_msf_jit.1} parent=5 // pred_check
      _
    $region34: #{_msf_jit.1} parent=5 // pred_check_branch
      %166 = sbr.rel (%p163) target = $region36
    $region35: #{_msf_jit.1} parent=5 // pred_region
      %s167 = ssub.s32 %s10, 1
      %p168 = scmp.lt.s32.totalorder %s15, 1
      %s169 = scalar_select %p168, %s15, 1
      %s170 = smul.addr %s169, 2
      %s171 = smul.addr %s170, 4
      %s172 = scalar_lea.vmem %s0, %s171
      %p173 = pneg %p36
      %p174 = pneg %p33
      %p175 = pneg %p57
      %p176 = pneg %p54
      %p177 = pneg %p78
      %p178 = pneg %p75
      %p179 = pneg %p99
      %p180 = pneg %p96
      %p181 = pneg %p125
      %p182 = pneg %p122
      %s183 = smul.u32 2, %s15
      %p184 = scmp.lt.s32.totalorder %s183, 3
      %s185 = scalar_select %p184, %s183, 3
      %s186 = smul.addr %s185, 8
      %s187 = scalar_lea.vmem %s4, %s186
      %p188 = scmp.lt.s32.totalorder %s15, 1
      %s189 = scalar_select %p188, %s15, 1
      %s190 = smul.addr %s189, 2
      %s191 = smul.addr %s190, 4
      %s192 = scalar_lea.vmem %s0, %s191
      %s193 = smul.u32 2, %s15
      %p194 = scmp.lt.s32.totalorder %s193, 3
      %s195 = scalar_select %p194, %s193, 3
      %s196 = smul.addr %s195, 8
      %s197 = scalar_lea.vmem %s4, %s196
      %s198 = smul.u32 2, %s15
      %vm200 = vcmask 257024
      %201 = vst.msk [vmem:[#allocation2] sm:$0xf] %vm200, 0
      %vm202 = vcmask 261124
      %203 = vst.msk [vmem:[#allocation2 + $0x8] sm:$0xf0] %vm202, 0
      %v204 = vld [vmem:[%s1] sm:$0xf]
      %v205 = vld [vmem:[%s1 + $0x4] sm:$0xf]
      %v206 = vld [vmem:[%s192] sm:$0xf]
      %v207 = vld [vmem:[%s192 + $0x4] sm:$0xf]
      %v210 = vunpack.c.l.b16 %v204
      %v211 = vunpack.c.l.b16 %v205
      %v212 = vpack.c.b16 %v211, %v210
      %v215 = vunpack.c.l.b16 %v206
      %v216 = vunpack.c.l.b16 %v207
      %v217 = vpack.c.b16 %v216, %v215
      %vm219 = vcmask 130048
      %v221 = vsel %vm219, %v212, 0
      %223 = vmatprep.subr.bf16.mxu0 0
      %224 = vmatpush1.bf16.msra.mxu0 %v217
      %225 = vmatprep.subr.bf16.mxu0 0
      %226 = vmatpush1.bf16.msra.mxu0 0
      %227 = vmatprep.subr.bf16.mxu0 0
      %228 = vmatpush1.bf16.msra.mxu0 0
      %229 = vmatprep.subr.bf16.mxu0 0
      %230 = vmatpush1.bf16.msra.mxu0 0
      %231 = vmatprep.subr.bf16.mxu0 0
      %232 = vmatpush1.bf16.msra.mxu0 0
      %233 = vmatprep.subr.bf16.mxu0 0
      %234 = vmatpush1.bf16.msra.mxu0 0
      %235 = vmatprep.subr.bf16.mxu0 0
      %236 = vmatpush1.bf16.msra.mxu0 0
      %237 = vmatprep.subr.bf16.mxu0 0
      %238 = vmatpush1.bf16.msra.mxu0 0
      %239 = vmatprep.subr.bf16.mxu0 0
      %240 = vmatpush1.bf16.msra.mxu0 0
      %241 = vmatprep.subr.bf16.mxu0 0
      %242 = vmatpush1.bf16.msra.mxu0 0
      %243 = vmatprep.subr.bf16.mxu0 0
      %244 = vmatpush1.bf16.msra.mxu0 0
      %245 = vmatprep.subr.bf16.mxu0 0
      %246 = vmatpush1.bf16.msra.mxu0 0
      %247 = vmatprep.subr.bf16.mxu0 0
      %248 = vmatpush1.bf16.msra.mxu0 0
      %249 = vmatprep.subr.bf16.mxu0 0
      %250 = vmatpush1.bf16.msra.mxu0 0
      %251 = vmatprep.subr.bf16.mxu0 0
      %252 = vmatpush1.bf16.msra.mxu0 0
      %253 = vmatprep.subr.bf16.mxu0 0
      %254 = vmatpush1.bf16.msra.mxu0 0
      %255 = vmatprep.mubr.bf16.mxu0 0
      %256 = vmatmul.mubr.bf16.gmra.mrb[0].mxu0 %v221
      %v257 = vpop.f32.mrb[0].mxu0
      %v258 = vadd.f32 0.0, %v257
      %v259 = vpop.f32.mrb[0].mxu0
      %v260 = vpop.f32.mrb[0].mxu0
      %v261 = vadd.f32 0.0, %v260
      %v262 = vpop.f32.mrb[0].mxu0
      %263 = vdwg.mxu0
      %v264 = vpack.c.bf16 %v261, %v258
      %v266 = vrot.slane %v264, 4
      %268 = vst.msk [vmem:[#allocation2] sm:$0xf0] %vm202, %v266
      %269 = vst.msk [vmem:[#allocation2 + $0x8] sm:$0xf] %vm200, %v266
      %v270 = vld [vmem:[#allocation2] sm:$0xff]
      %v271 = vld [vmem:[#allocation2 + $0x8] sm:$0xff]
      %v272 = vld [vmem:[%s2] sm:$0xff]
      %v273 = vld [vmem:[%s2 + $0x8] sm:$0xff]
      %v274 = vld [vmem:[%s2 + $0x10] sm:$0xff]
      %v275 = vld [vmem:[%s2 + $0x18] sm:$0xff]
      %v280 = vunpack.c.l.b16 %v272
      %v281 = vunpack.c.h.b16 %v272
      %v282 = vunpack.c.l.b16 %v273
      %v283 = vunpack.c.h.b16 %v273
      %v284 = vunpack.c.l.b16 %v274
      %v285 = vunpack.c.h.b16 %v274
      %v286 = vunpack.c.l.b16 %v275
      %v287 = vunpack.c.h.b16 %v275
      %v288 = vpack.c.b16 %v282, %v280
      %v289 = vpack.c.b16 %v283, %v281
      %v290 = vpack.c.b16 %v286, %v284
      %v291 = vpack.c.b16 %v287, %v285
      %vm296 = vcmask 261120
      %v298 = vsel %vm296, %v270, 0
      %v301 = vsel %vm296, %v271, 0
      %303 = vmatprep.subr.bf16.mxu0 %v289
      %304 = vmatpush1.bf16.msra.mxu0 %v288
      %305 = vmatprep.subr.bf16.mxu0 %v291
      %306 = vmatpush1.bf16.msra.mxu0 %v290
      %307 = vmatprep.subr.bf16.mxu0 0
      %308 = vmatpush1.bf16.msra.mxu0 0
      %309 = vmatprep.subr.bf16.mxu0 0
      %310 = vmatpush1.bf16.msra.mxu0 0
      %311 = vmatprep.subr.bf16.mxu0 0
      %312 = vmatpush1.bf16.msra.mxu0 0
      %313 = vmatprep.subr.bf16.mxu0 0
      %314 = vmatpush1.bf16.msra.mxu0 0
      %315 = vmatprep.subr.bf16.mxu0 0
      %316 = vmatpush1.bf16.msra.mxu0 0
      %317 = vmatprep.subr.bf16.mxu0 0
      %318 = vmatpush1.bf16.msra.mxu0 0
      %319 = vmatprep.subr.bf16.mxu0 0
      %320 = vmatpush1.bf16.msra.mxu0 0
      %321 = vmatprep.subr.bf16.mxu0 0
      %322 = vmatpush1.bf16.msra.mxu0 0
      %323 = vmatprep.subr.bf16.mxu0 0
      %324 = vmatpush1.bf16.msra.mxu0 0
      %325 = vmatprep.subr.bf16.mxu0 0
      %326 = vmatpush1.bf16.msra.mxu0 0
      %327 = vmatprep.subr.bf16.mxu0 0
      %328 = vmatpush1.bf16.msra.mxu0 0
      %329 = vmatprep.subr.bf16.mxu0 0
      %330 = vmatpush1.bf16.msra.mxu0 0
      %331 = vmatprep.subr.bf16.mxu0 0
      %332 = vmatpush1.bf16.msra.mxu0 0
      %333 = vmatprep.subr.bf16.mxu0 0
      %334 = vmatpush1.bf16.msra.mxu0 0
      %335 = vmatprep.mubr.bf16.mxu0 0
      %336 = vmatmul.mubr.bf16.gmra.mrb[0].mxu0 %v298
      %v337 = vpop.f32.mrb[0].mxu0
      %v338 = vadd.f32 0.0, %v337
      %v339 = vpop.f32.mrb[0].mxu0
      %v340 = vpop.f32.mrb[0].mxu0
      %v341 = vadd.f32 0.0, %v340
      %v342 = vpop.f32.mrb[0].mxu0
      %v343 = vadd.f32 0.0, %v342
      %344 = vmatprep.mubr.bf16.mxu0 0
      %345 = vmatmul.mubr.bf16.gmra.mrb[0].mxu0 %v301
      %v346 = vpop.f32.mrb[0].mxu0
      %v347 = vadd.f32 0.0, %v346
      %v348 = vpop.f32.mrb[0].mxu0
      %v349 = vadd.f32 0.0, %v348
      %v350 = vpop.f32.mrb[0].mxu0
      %v351 = vadd.f32 0.0, %v350
      %v352 = vpop.f32.mrb[0].mxu0
      %v353 = vadd.f32 0.0, %v352
      %354 = vdwg.mxu0
      %v355 = vld [vmem:[%s3] sm:$0x1]
      %v357 = vlaneseq
      %v358 = vshrl.u32 %v357, 7
      %v359 = vsub.s32 0, %v358
      %v360 = vrot.slane %v355, %v359
      %v362 = vadd.f32 %v341, %v360
      %v363 = vadd.f32 %v347, %v360
      %364 = vst.msk [vmem:[%s197] sm:$0xff] %vm296, %v362
      %365 = vst.msk [vmem:[%s197 + $0x8] sm:$0xff] %vm296, %v363
      %vm369 = vcmask 1046528
      %v370 = vrot.slane %v341, 1
      %v371 = vrot.slane %v347, 1
      %v372 = vsel %vm369, %v370, %v371
      %v373 = vrot.slane %v351, 1
      %v374 = vsel %vm369, %v371, %v373
      %375 = vrot.lane.b32.xlu0 %v372, 96
      %v376 = vpop.permute.xlu0 %375
      %377 = vrot.lane.b32.xlu0 %v374, 96
      %v378 = vpop.permute.xlu0 %377
      %v381 = vadd.f32 %v341, %v376
      %v382 = vadd.f32 %v347, %v378
      %v383 = vld [vmem:[%s3] sm:$0x1]
      %v385 = vlaneseq
      %v386 = vshrl.u32 %v385, 7
      %v387 = vsub.s32 0, %v386
      %v388 = vrot.slane %v383, %v387
      %v390 = vadd.f32 %v381, %v388
      %v391 = vadd.f32 %v382, %v388
      %vm392 = vcmask 523520
      %393 = vst.msk [vmem:[%s197] sm:$0xff] %vm392, %v390
      %394 = vst.msk [vmem:[%s197 + $0x8] sm:$0xff] %vm392, %v391
      %v397 = vrot.slane %v343, 1
      %v398 = vrot.slane %v349, 1
      %v399 = vsel %vm369, %v397, %v398
      %400 = vrot.lane.b32.xlu0 %v397, 96
      %v401 = vpop.permute.xlu0 %400
      %402 = vrot.lane.b32.xlu0 %v399, 96
      %v403 = vpop.permute.xlu0 %402
      %404 = vrot.lane.b32.xlu0 %v398, 96
      %v405 = vpop.permute.xlu0 %404
      %v409 = vadd.f32 %v338, %v401
      %v410 = vadd.f32 %v341, %v403
      %v411 = vadd.f32 %v347, %v405
      %vm413 = vcmask 1045504
      %v414 = vrot.slane %v343, 2
      %v415 = vrot.slane %v349, 2
      %v416 = vsel %vm413, %v414, %v415
      %v417 = vrot.slane %v353, 2
      %v418 = vsel %vm413, %v415, %v417
      %419 = vrot.lane.b32.xlu0 %v414, 64
      %v420 = vpop.permute.xlu0 %419
      %421 = vrot.lane.b32.xlu0 %v416, 64
      %v422 = vpop.permute.xlu0 %421
      %423 = vrot.lane.b32.xlu0 %v418, 64
      %v424 = vpop.permute.xlu0 %423
      %v428 = vadd.f32 %v409, %v420
      %v429 = vadd.f32 %v410, %v422
      %v430 = vadd.f32 %v411, %v424
      %vm431 = vcmask 1044480
      %v432 = vrot.slane %v343, 3
      %v433 = vrot.slane %v349, 3
      %v434 = vsel %vm431, %v432, %v433
      %v435 = vrot.slane %v353, 3
      %v436 = vsel %vm431, %v433, %v435
      %437 = vrot.lane.b32.xlu0 %v432, 32
      %v438 = vpop.permute.xlu0 %437
      %439 = vrot.lane.b32.xlu0 %v434, 32
      %v440 = vpop.permute.xlu0 %439
      %441 = vrot.lane.b32.xlu0 %v436, 32
      %v442 = vpop.permute.xlu0 %441
      %v446 = vadd.f32 %v428, %v438
      %v447 = vadd.f32 %v429, %v440
      %v448 = vadd.f32 %v430, %v442
      %v449 = vld [vmem:[%s3] sm:$0x1]
      %v451 = vlaneseq
      %v452 = vshrl.u32 %v451, 7
      %v453 = vsub.s32 0, %v452
      %v454 = vrot.slane %v449, %v453
      %455 = vrot.lane.b32.xlu0 %v454, 32
      %v456 = vpop.permute.xlu0 %455
      %v458 = vadd.f32 %v446, %v456
      %v459 = vadd.f32 %v447, %v456
      %v460 = vadd.f32 %v448, %v456
      %464 = vrot.lane.b32.xlu0 %v458, 96
      %v465 = vpop.permute.xlu0 %464
      %466 = vrot.lane.b32.xlu0 %v459, 96
      %v467 = vpop.permute.xlu0 %466
      %468 = vrot.lane.b32.xlu0 %v460, 96
      %v469 = vpop.permute.xlu0 %468
      %vm473 = vcmask 785927
      %474 = vst.msk [vmem:[%s197 - $0x7] sm:$0x80] %vm473, %v465
      %vm475 = vcmask 785920
      %476 = vst.msk [vmem:[%s197 + $0x1] sm:$0xff] %vm475, %v467
      %vm477 = vcmask 784896
      %478 = vst.msk [vmem:[%s197 + $0x9] sm:$0x7f] %vm477, %v469
      %s479 = smul.u32 2, %s15
      %p480 = scmp.lt.s32.totalorder %s479, 3
      %s481 = scalar_select %p480, %s479, 3
      %s482 = smul.addr %s481, 8
      %s483 = scalar_lea.vmem %s4, %s482
      // Predicated region
      $region37: #{_msf_jit.1} parent=35 // pred_check
        %p484 = pneg %p122
      $region38: #{_msf_jit.1} parent=35 // pred_check_branch
        %486 = sbr.rel (%p484) target = $region40
      $region39: #{_msf_jit.1} parent=35 // pred_region
        %s487 = smul.u32 2, %s15
      $region40: #{_msf_jit.1} parent=35 // pred_fallthru
        _
    $region36: #{_msf_jit.1} parent=5 // pred_fallthru
      _
    %p488 = scmp.le.s32.totalorder 2, %s10
    // Predicated region
    $region41: #{_msf_jit.1} parent=5 // pred_check
      %p489 = pneg %p488
    $region42: #{_msf_jit.1} parent=5 // pred_check_branch
      %491 = sbr.rel (%p489) target = $region44
    $region43: #{_msf_jit.1} parent=5 // pred_region
      %s492 = ssub.s32 %s10, 2
      // Predicated region
      $region45: #{_msf_jit.1} parent=43 // pred_check
        %p493 = pneg %p128
      $region46: #{_msf_jit.1} parent=43 // pred_check_branch
        %495 = sbr.rel (%p493) target = $region48
      $region47: #{_msf_jit.1} parent=43 // pred_region
        %s496 = smul.u32 2, %s16
        %p497 = scmp.lt.s32.totalorder %s496, 3
        %s498 = scalar_select %p497, %s496, 3
        %s499 = smul.addr %s498, 8
        %s500 = scalar_lea.vmem %s4, %s499
      $region48: #{_msf_jit.1} parent=43 // pred_fallthru
        _
    $region44: #{_msf_jit.1} parent=5 // pred_fallthru
      _
  $region6: #{_msf_jit.1} parent=0 // loop_footer
    %s14 = sadd.s32 1, %s10
  $region7: #{_msf_jit.1} parent=0 // loop_footer_branch
    %9 = sbr.rel target = $region3
  $region8: #{_msf_jit.1} parent=0 // loop_exit
    _

</llo_original>
